<compile_context>
chip_gen: v6e
topology: v6e:2x2x1
jax: 0.10.0
libtpu: 0.0.40
codegen_flags: <defaults>
</compile_context>

<pallas_src>
import functools

import jax
import jax.numpy as jnp
from jax import lax
from jax.experimental import pallas as pl
from jax.experimental.pallas import tpu as pltpu


def _batch_loss_kernel(w_ref, yflat_ref, out_ref, *,
                       num_features, commission_ratio, interest_rate):
    # w_ref     : [B, A]    portfolio weights (cash first, A = m + 1)
    # yflat_ref : [B, m*F]  features, row-major over (asset, feature):
    #                       close price of asset i sits at lane i * F.
    # out_ref   : [1, 2]    (mean loss, portfolio value)
    B, A = w_ref.shape
    m = A - 1
    F = num_features

    w = w_ref[...].astype(jnp.float32)            # [B, A]
    yflat = yflat_ref[...].astype(jnp.float32)    # [B, m*F]

    # Extract close-price relatives c[b, i] = yflat[b, i*F] with a one-hot
    # selection matmul (no cheap VPU form for a lane-strided pick; the MXU is
    # idle in this kernel so this is free).
    row = lax.broadcasted_iota(jnp.int32, (m * F, m), 0)
    col = lax.broadcasted_iota(jnp.int32, (m * F, m), 1)
    sel = (row == col * F).astype(jnp.float32)     # [m*F, m]
    c = jnp.dot(yflat, sel, preferred_element_type=jnp.float32)   # [B, m]

    w_cash = w[:, 0:1]                             # [B, 1] (cash price == 1)
    w_risk = w[:, 1:]                              # [B, m]

    # element_reward = w * close_price  (cash column is just w_cash)
    er_risk = w_risk * c                           # [B, m]

    # reward0[b] = <w[b], p[b]>,  p = [1 | close]
    reward0 = w_cash + jnp.sum(er_risk, axis=1, keepdims=True)      # [B, 1]

    # interest: only negative element rewards contribute, summed over assets
    interest = (jnp.minimum(w_cash, 0.0)
                + jnp.sum(jnp.minimum(er_risk, 0.0), axis=1, keepdims=True)
                ) * interest_rate                                   # [B, 1]

    # future_omega = w * p / reward0  -> EUP reciprocal + VPU multiplies
    inv_r = pl.reciprocal(reward0, approx=False)                    # [B, 1]
    fo_cash = w_cash * inv_r                                        # [B, 1]
    fo_risk = er_risk * inv_r                                       # [B, m]

    # pure_pc[b] = 1 - commission * sum_a |future_omega[b-1, a] - w[b, a]|
    # pure_pc[0] = 1  (the b = 0 circular wrap of the roll is masked below)
    fo_cash_prev = pltpu.roll(fo_cash, shift=1, axis=0)             # [B, 1]
    fo_risk_prev = pltpu.roll(fo_risk, shift=1, axis=0)             # [B, m]
    diff = (jnp.abs(fo_cash_prev - w_cash)
            + jnp.sum(jnp.abs(fo_risk_prev - w_risk), axis=1, keepdims=True))
    b_idx = lax.broadcasted_iota(jnp.int32, diff.shape, 0)
    pure_pc = jnp.where(b_idx == 0, 1.0, 1.0 - diff * commission_ratio)

    # final per-step reward
    reward = reward0 * pure_pc + interest                           # [B, 1]

    # Single batch reduction:  s = sum_b log(reward[b])
    #   loss            = mean(-log(reward)) = -s / B
    #   portfolio_value = prod_b reward[b]   = exp(s)   (reward > 0 wherever
    #                                                    the loss is finite)
    s = jnp.sum(jnp.log(reward), keepdims=True)                     # [1, 1]
    lane = lax.broadcasted_iota(jnp.int32, (1, 2), 1)
    out = jnp.where(lane == 0, s * (-1.0 / B), jnp.exp(s))          # [1, 2]
    out_ref[...] = out.astype(out_ref.dtype)


def batch_loss(w, y, *, commission_ratio, interest_rate,
               gamma=0.1, beta=0.1, size_average=True):
    """Pallas port of Batch_Loss.forward.

    w : [B, 1, A]  portfolio weights (A = num_assets + 1, cash first)
    y : [B, m, F]  price-relative features, m = A - 1, y[:, :, 0] = close prices
    Returns (loss_scalar, portfolio_value_scalar).
    """
    del gamma, beta, size_average  # reference forward ignores them (both branches use mean)
    B, _, A = w.shape
    m, F = y.shape[1], y.shape[2]
    assert A == m + 1

    # Free (bitcast) reshape; the close plane is selected inside the kernel so
    # no strided-slice HLO / extra HBM round trip is emitted.
    y_flat = y.reshape(B, m * F)

    kernel = functools.partial(
        _batch_loss_kernel,
        num_features=F,
        commission_ratio=float(commission_ratio),
        interest_rate=float(interest_rate),
    )

    out = pl.pallas_call(
        kernel,
        grid=(1,),
        out_shape=jax.ShapeDtypeStruct((1, 2), jnp.float32),
        in_specs=[
            # Drop w's singleton middle dim via a squeezed block dim -> kernel sees [B, A].
            pl.BlockSpec((B, None, A), lambda i: (0, 0, 0)),
            pl.BlockSpec((B, m * F), lambda i: (0, 0)),
        ],
        out_specs=pl.BlockSpec((1, 2), lambda i: (0, 0)),
        compiler_params=pltpu.CompilerParams(dimension_semantics=("arbitrary",)),
        cost_estimate=pl.CostEstimate(
            flops=B * (12 * m + 32),
            transcendentals=2 * B + 1,
            bytes_accessed=(B * A + B * m * F + 2) * 4,
        ),
    )(w, y_flat)

    return out[0, 0], out[0, 1]


def _reference(w, y, commission_ratio, interest_rate):
    """Pure-jnp transcription of the torch forward (for sanity checking)."""
    B = w.shape[0]
    close = y[:, :, 0:1]                                            # [B, m, 1]
    p = jnp.concatenate([jnp.ones((B, 1, 1), w.dtype), close], axis=1)   # [B, A, 1]
    reward = jnp.matmul(w, p)                                       # [B, 1, 1]
    p_row = jnp.transpose(p, (0, 2, 1))                             # [B, 1, A]
    er = w * p_row
    interest = jnp.sum(jnp.minimum(er, 0.0), axis=2, keepdims=True) * interest_rate
    fo = er / reward
    diff = jnp.sum(jnp.abs(fo[:-1] - w[1:]), axis=-1)               # [B-1, 1]
    pure_pc = jnp.concatenate([jnp.ones((1, 1), w.dtype),
                               1.0 - diff * commission_ratio], axis=0)   # [B, 1]
    reward = reward * pure_pc[:, None, :] + interest
    pv = jnp.prod(reward, axis=0)[0, 0]
    loss = jnp.mean(-jnp.log(reward))
    return loss, pv


if __name__ == "__main__":
    # Small synthetic problem: B=8 time-steps, 11 risky assets (+1 cash = 12), 3 features.
    B, m, F = 8, 11, 3
    A = m + 1
    commission_ratio = 0.0025
    interest_rate = 0.02 / 250.0

    key = jax.random.PRNGKey(0)
    kw, ky = jax.random.split(key)

    # Weights via softmax -> positive, sum to 1 (guarantees reward > 0 so log is finite).
    w = jax.nn.softmax(jax.random.normal(kw, (B, 1, A), dtype=jnp.float32), axis=-1)
    # Price relatives near 1.0 (column 0 is the close-price relative used by the loss).
    y = 1.0 + 0.05 * jax.random.normal(ky, (B, m, F), dtype=jnp.float32)
    y = jnp.clip(y, 0.5, 1.5)

    loss, pv = jax.jit(
        functools.partial(batch_loss,
                          commission_ratio=commission_ratio,
                          interest_rate=interest_rate)
    )(w, y)
    jax.block_until_ready((loss, pv))

    loss_ref, pv_ref = _reference(w, y, commission_ratio, interest_rate)
    assert jnp.allclose(loss, loss_ref, rtol=1e-4, atol=1e-4), (loss, loss_ref)
    assert jnp.allclose(pv, pv_ref, rtol=1e-4, atol=1e-4), (pv, pv_ref)

    print("KERNEL_OK")
</pallas_src>

<mosaic_0001>
module attributes {stable_mosaic.version = 11 : i64} {
  func.func @_batch_loss_kernel(%arg0: i32, %arg1: memref<8x1x12xf32, #tpu.memory_space<vmem>>, %arg2: memref<8x33xf32, #tpu.memory_space<vmem>>, %arg3: memref<1x2xf32, #tpu.memory_space<vmem>>) attributes {dimension_semantics = [#tpu.dimension_semantics<arbitrary>], iteration_bounds = array<i64: 1>, scalar_prefetch = 0 : i64, scratch_operands = 0 : i64, tpu.core_type = #tpu.core_type<tc>, window_params = [{pipeline_mode = #tpu.pipeline_mode<synchronous>, transform_indices = @transform_0, window_bounds = array<i64: 8, 1, 12>}, {pipeline_mode = #tpu.pipeline_mode<synchronous>, transform_indices = @transform_1, window_bounds = array<i64: 8, 33>}, {pipeline_mode = #tpu.pipeline_mode<synchronous>, transform_indices = @transform_2, window_bounds = array<i64: 1, 2>}]} {
    %c0 = arith.constant 0 : index
    %c0_0 = arith.constant 0 : index
    %c0_1 = arith.constant 0 : index
    %0 = vector.load %arg1[%c0, %c0_0, %c0_1] : memref<8x1x12xf32, #tpu.memory_space<vmem>>, vector<8x1x12xf32>
    %1 = vector.shape_cast %0 : vector<8x1x12xf32> to vector<8x12xf32>
    %c0_2 = arith.constant 0 : index
    %c0_3 = arith.constant 0 : index
    %2 = vector.load %arg2[%c0_2, %c0_3] : memref<8x33xf32, #tpu.memory_space<vmem>>, vector<8x33xf32>
    %3 = tpu.iota {dimensions = array<i32: 0>} : vector<33x11xi32>
    %4 = tpu.iota {dimensions = array<i32: 1>} : vector<33x11xi32>
    %c3_i32 = arith.constant 3 : i32
    %5 = vector.broadcast %c3_i32 : i32 to vector<33x11xi32>
    %6 = arith.muli %4, %5 : vector<33x11xi32>
    %7 = arith.cmpi eq, %3, %6 : vector<33x11xi32>
    %8 = arith.extui %7 : vector<33x11xi1> to vector<33x11xi32>
    %9 = arith.sitofp %8 : vector<33x11xi32> to vector<33x11xf32>
    %cst = arith.constant dense<0.000000e+00> : vector<8x11xf32>
    %10 = tpu.matmul %2, %9, %cst {dimension_numbers = #tpu.dot_dimension_numbers<[1], [0], [0], [1], [0, 0, 1, 1], [], []>} : vector<8x33xf32>, vector<33x11xf32>, vector<8x11xf32> -> vector<8x11xf32>
    %11 = vector.extract_strided_slice %1 {offsets = [0, 0], sizes = [8, 1], strides = [1, 1]} : vector<8x12xf32> to vector<8x1xf32>
    %12 = vector.extract_strided_slice %1 {offsets = [0, 1], sizes = [8, 11], strides = [1, 1]} : vector<8x12xf32> to vector<8x11xf32>
    %13 = arith.mulf %12, %10 : vector<8x11xf32>
    %cst_4 = arith.constant dense<0.000000e+00> : vector<8xf32>
    %14 = vector.multi_reduction <add>, %13, %cst_4 [1] : vector<8x11xf32> to vector<8xf32>
    %15 = vector.shape_cast %14 : vector<8xf32> to vector<8x1xf32>
    %16 = arith.addf %11, %15 : vector<8x1xf32>
    %cst_5 = arith.constant 0.000000e+00 : f32
    %17 = vector.broadcast %cst_5 : f32 to vector<8x1xf32>
    %18 = arith.minimumf %11, %17 : vector<8x1xf32>
    %cst_6 = arith.constant 0.000000e+00 : f32
    %19 = vector.broadcast %cst_6 : f32 to vector<8x11xf32>
    %20 = arith.minimumf %13, %19 : vector<8x11xf32>
    %cst_7 = arith.constant dense<0.000000e+00> : vector<8xf32>
    %21 = vector.multi_reduction <add>, %20, %cst_7 [1] : vector<8x11xf32> to vector<8xf32>
    %22 = vector.shape_cast %21 : vector<8xf32> to vector<8x1xf32>
    %23 = arith.addf %18, %22 : vector<8x1xf32>
    %cst_8 = arith.constant 8.000000e-05 : f32
    %24 = vector.broadcast %cst_8 : f32 to vector<8x1xf32>
    %25 = arith.mulf %23, %24 : vector<8x1xf32>
    %26 = tpu.reciprocal %16 : vector<8x1xf32> -> vector<8x1xf32>
    %27 = arith.mulf %11, %26 : vector<8x1xf32>
    %28 = vector.broadcast %26 : vector<8x1xf32> to vector<8x11xf32>
    %29 = arith.mulf %13, %28 : vector<8x11xf32>
    %c1_i32 = arith.constant 1 : i32
    %30 = tpu.dynamic_rotate %27 by %c1_i32 dim 0 : vector<8x1xf32>, i32 -> vector<8x1xf32>
    %c1_i32_9 = arith.constant 1 : i32
    %31 = tpu.dynamic_rotate %29 by %c1_i32_9 dim 0 : vector<8x11xf32>, i32 -> vector<8x11xf32>
    %32 = arith.subf %30, %11 : vector<8x1xf32>
    %33 = math.absf %32 : vector<8x1xf32>
    %34 = arith.subf %31, %12 : vector<8x11xf32>
    %35 = math.absf %34 : vector<8x11xf32>
    %cst_10 = arith.constant dense<0.000000e+00> : vector<8xf32>
    %36 = vector.multi_reduction <add>, %35, %cst_10 [1] : vector<8x11xf32> to vector<8xf32>
    %37 = vector.shape_cast %36 : vector<8xf32> to vector<8x1xf32>
    %38 = arith.addf %33, %37 : vector<8x1xf32>
    %39 = tpu.iota {dimensions = array<i32: 0>} : vector<8x1xi32>
    %c0_i32 = arith.constant 0 : i32
    %40 = vector.broadcast %c0_i32 : i32 to vector<8x1xi32>
    %41 = arith.cmpi eq, %39, %40 : vector<8x1xi32>
    %cst_11 = arith.constant 2.500000e-03 : f32
    %42 = vector.broadcast %cst_11 : f32 to vector<8x1xf32>
    %43 = arith.mulf %38, %42 : vector<8x1xf32>
    %cst_12 = arith.constant 1.000000e+00 : f32
    %44 = vector.broadcast %cst_12 : f32 to vector<8x1xf32>
    %45 = arith.subf %44, %43 : vector<8x1xf32>
    %cst_13 = arith.constant 1.000000e+00 : f32
    %46 = vector.broadcast %cst_13 : f32 to vector<8x1xf32>
    %47 = arith.select %41, %46, %45 : vector<8x1xi1>, vector<8x1xf32>
    %48 = arith.mulf %16, %47 : vector<8x1xf32>
    %49 = arith.addf %48, %25 : vector<8x1xf32>
    %50 = math.log %49 : vector<8x1xf32>
    %51 = vector.shape_cast %50 : vector<8x1xf32> to vector<1x8x1xf32>
    %cst_14 = arith.constant dense<0.000000e+00> : vector<1xf32>
    %52 = vector.multi_reduction <add>, %51, %cst_14 [1, 2] : vector<1x8x1xf32> to vector<1xf32>
    %53 = vector.shape_cast %52 : vector<1xf32> to vector<1x1x1xf32>
    %54 = vector.extract %53[0, 0, 0] : f32 from vector<1x1x1xf32>
    %55 = vector.broadcast %54 : f32 to vector<1x1xf32>
    %56 = tpu.iota {dimensions = array<i32: 1>} : vector<1x2xi32>
    %c0_i32_15 = arith.constant 0 : i32
    %57 = vector.broadcast %c0_i32_15 : i32 to vector<1x2xi32>
    %58 = arith.cmpi eq, %56, %57 : vector<1x2xi32>
    %cst_16 = arith.constant -1.250000e-01 : f32
    %59 = vector.broadcast %cst_16 : f32 to vector<1x1xf32>
    %60 = arith.mulf %55, %59 : vector<1x1xf32>
    %61 = math.exp %55 : vector<1x1xf32>
    %62 = vector.shape_cast %60 : vector<1x1xf32> to vector<1x1xf32>
    %63 = vector.broadcast %62 : vector<1x1xf32> to vector<1x2xf32>
    %64 = vector.shape_cast %61 : vector<1x1xf32> to vector<1x1xf32>
    %65 = vector.broadcast %64 : vector<1x1xf32> to vector<1x2xf32>
    %66 = arith.select %58, %63, %65 : vector<1x2xi1>, vector<1x2xf32>
    %c0_17 = arith.constant 0 : index
    %c0_18 = arith.constant 0 : index
    %67 = vector.load %arg3[%c0_17, %c0_18] : memref<1x2xf32, #tpu.memory_space<vmem>>, vector<1x2xf32>
    tpu.vector_store %arg3[%c0_17, %c0_18], %66 {strides = array<i32>} : memref<1x2xf32, #tpu.memory_space<vmem>>, vector<1x2xf32>,
    return
  }
  func.func @transform_0(%arg0: i32) -> (i32, i32, i32) {
    %c0_i32 = arith.constant 0 : i32
    %c0_i32_0 = arith.constant 0 : i32
    %c0_i32_1 = arith.constant 0 : i32
    %c0_i32_2 = arith.constant 0 : i32
    return %c0_i32, %c0_i32_0, %c0_i32_1 : i32, i32, i32
  }
  func.func @transform_1(%arg0: i32) -> (i32, i32) {
    %c0_i32 = arith.constant 0 : i32
    %c0_i32_0 = arith.constant 0 : i32
    %c0_i32_1 = arith.constant 0 : i32
    return %c0_i32, %c0_i32_0 : i32, i32
  }
  func.func @transform_2(%arg0: i32) -> (i32, i32) {
    %c0_i32 = arith.constant 0 : i32
    %c0_i32_0 = arith.constant 0 : i32
    %c0_i32_1 = arith.constant 0 : i32
    return %c0_i32, %c0_i32_0 : i32, i32
  }
}

</mosaic_0001>

<llo_original>
// kernel: batch_loss.1
$region0: #{batch_loss.1}
  #allocation0 [shape = 'u32[]', space=smem, size = 0x4, offset = 0x4, fixed_abs, tag = 'smem constant byte address 0x4 - core index']
  #allocation1 [shape = 'u32[144,128]{1,0:T(1,128)}', space=vmem, size = 0x12000, scoped, tag = 'internal scratch']
  %s0 = inlined_call_operand.vmem [shape: f32[8,1,12], index: 0, kind: input, shape index: {}]
  %s1 = inlined_call_operand.vmem [shape: f32[8,33], index: 1, kind: input, shape index: {}]
  %s2 = inlined_call_operand.vmem [shape: f32[1,2], index: 2, kind: output, shape index: {}]
  %s3 = sld [smem:[#allocation0]]
  $region18: #{batch_loss.1} parent=0
    _
  %s5 = ssub.s32 1, %s3
  %s6 = scalar_select 0, %s5, %s3
  // Predicated region
  $region2: #{batch_loss.1} parent=0 // pred_check
    _
  $region3: #{batch_loss.1} parent=0 // pred_check_branch
    %8 = sbr.rel (0) target = $region5
  $region4: #{batch_loss.1} parent=0 // pred_region
    _
  $region5: #{batch_loss.1} parent=0 // pred_fallthru
    _
  // Predicated region
  $region6: #{batch_loss.1} parent=0 // pred_check
    _
  $region7: #{batch_loss.1} parent=0 // pred_check_branch
    %10 = sbr.rel (0) target = $region9
  $region8: #{batch_loss.1} parent=0 // pred_region
    _
  $region9: #{batch_loss.1} parent=0 // pred_fallthru
    _
  %v11 = vld [vmem:[%s0] sm:$0x1]
  %v12 = vld [vmem:[%s0 + $0x1] sm:$0x1]
  %v13 = vld [vmem:[%s0 + $0x2] sm:$0x1]
  %v14 = vld [vmem:[%s0 + $0x3] sm:$0x1]
  %v15 = vld [vmem:[%s0 + $0x4] sm:$0x1]
  %v16 = vld [vmem:[%s0 + $0x5] sm:$0x1]
  %v17 = vld [vmem:[%s0 + $0x6] sm:$0x1]
  %v18 = vld [vmem:[%s0 + $0x7] sm:$0x1]
  %v19 = vld [vmem:[%s1] sm:$0xff]
  %v20 = vlaneseq
  %v21 = vshrl.u32 %v20, 7
  %v22 = vadd.s32 %v21, 8
  %v23 = vadd.s32 %v21, 16
  %v24 = vadd.s32 %v21, 24
  %v25 = vadd.s32 %v21, 32
  %v26 = vlaneseq
  %v27 = vand.u32 %v26, 127
  %v28 = vmul.u32 %v27, 3
  %vm29 = vcmp.eq.s32.totalorder %v21, %v28
  %vm30 = vcmp.eq.s32.totalorder %v22, %v28
  %vm31 = vcmp.eq.s32.totalorder %v23, %v28
  %vm32 = vcmp.eq.s32.totalorder %v24, %v28
  %vm33 = vcmp.eq.s32.totalorder %v25, %v28
  %v34 = vsel %vm29, 1, 0
  %v35 = vsel %vm30, 1, 0
  %v36 = vsel %vm31, 1, 0
  %v37 = vsel %vm32, 1, 0
  %v38 = vsel %vm33, 1, 0
  %v39 = vcvt.s32.f32 %v34
  %v40 = vcvt.s32.f32 %v35
  %v41 = vcvt.s32.f32 %v36
  %v42 = vcvt.s32.f32 %v37
  %v43 = vcvt.s32.f32 %v38
  %vm44 = vcmask 269312
  %v46 = vsel %vm44, %v19, 0
  %vm48 = vcmask 1040384
  %v50 = vsel %vm48, %v43, 0
  %52 = vmatprep.subr.mxu0 0.0
  %53 = vmatpush1.msra.mxu0 0.0
  %54 = vmatprep.subr.mxu0 0.0
  %55 = vmatpush1.msra.mxu0 0.0
  %56 = vmatprep.subr.mxu0 0.0
  %57 = vmatpush1.msra.mxu0 0.0
  %58 = vmatprep.subr.mxu0 0.0
  %59 = vmatpush1.msra.mxu0 0.0
  %60 = vmatprep.subr.mxu0 0.0
  %61 = vmatpush1.msra.mxu0 0.0
  %62 = vmatprep.subr.mxu0 0.0
  %63 = vmatpush1.msra.mxu0 0.0
  %64 = vmatprep.subr.mxu0 0.0
  %65 = vmatpush1.msra.mxu0 0.0
  %66 = vmatprep.subr.mxu0 0.0
  %67 = vmatpush1.msra.mxu0 0.0
  %68 = vmatprep.subr.mxu0 0.0
  %69 = vmatpush1.msra.mxu0 0.0
  %70 = vmatprep.subr.mxu0 0.0
  %71 = vmatpush1.msra.mxu0 0.0
  %72 = vmatprep.subr.mxu0 0.0
  %73 = vmatpush1.msra.mxu0 0.0
  %74 = vmatprep.subr.mxu0 0.0
  %75 = vmatpush1.msra.mxu0 %v50
  %76 = vmatprep.subr.mxu0 0.0
  %77 = vmatpush1.msra.mxu0 %v42
  %78 = vmatprep.subr.mxu0 0.0
  %79 = vmatpush1.msra.mxu0 %v41
  %80 = vmatprep.subr.mxu0 0.0
  %81 = vmatpush1.msra.mxu0 %v40
  %82 = vmatprep.subr.mxu0 0.0
  %83 = vmatpush1.msra.mxu0 %v39
  %84 = vmatprep.subr.mxu0 0.0
  %85 = vmatpush2.msra.mxu0 0.0
  %86 = vmatprep.subr.mxu0 0.0
  %87 = vmatpush2.msra.mxu0 0.0
  %88 = vmatprep.subr.mxu0 0.0
  %89 = vmatpush2.msra.mxu0 0.0
  %90 = vmatprep.subr.mxu0 0.0
  %91 = vmatpush2.msra.mxu0 0.0
  %92 = vmatprep.subr.mxu0 0.0
  %93 = vmatpush2.msra.mxu0 0.0
  %94 = vmatprep.subr.mxu0 0.0
  %95 = vmatpush2.msra.mxu0 0.0
  %96 = vmatprep.subr.mxu0 0.0
  %97 = vmatpush2.msra.mxu0 0.0
  %98 = vmatprep.subr.mxu0 0.0
  %99 = vmatpush2.msra.mxu0 0.0
  %100 = vmatprep.subr.mxu0 0.0
  %101 = vmatpush2.msra.mxu0 0.0
  %102 = vmatprep.subr.mxu0 0.0
  %103 = vmatpush2.msra.mxu0 0.0
  %104 = vmatprep.subr.mxu0 0.0
  %105 = vmatpush2.msra.mxu0 0.0
  %106 = vmatprep.subr.mxu0 0.0
  %107 = vmatpush2.msra.mxu0 0.0
  %108 = vmatprep.subr.mxu0 0.0
  %109 = vmatpush2.msra.mxu0 0.0
  %110 = vmatprep.subr.mxu0 0.0
  %111 = vmatpush2.msra.mxu0 0.0
  %112 = vmatprep.subr.mxu0 0.0
  %113 = vmatpush2.msra.mxu0 0.0
  %114 = vmatprep.subr.mxu0 0.0
  %115 = vmatpush2.msra.mxu0 0.0
  %116 = vmatprep.mubr.f32.mxu0 0.0
  %117 = vmatmul.mubr.f32.gmra.mxu0 %v46
  %v118 = vpop.f32.mrf.mxu0
  %v119 = vadd.f32 0.0, %v118
  %v120 = vpop.f32.mrf.mxu0
  %121 = vdwg.mxu0
  %v123 = vcombine.high %v119, %v119
  %v125 = vunpack.c.l.s4 1966171168
  %v126 = vunpack.c.0.s8 %v125
  %v127 = vlaneseq
  %v128 = vshrl.u32 %v127, 7
  %v129 = vsub.s32 %v126, %v128
  %v130 = vrot.slane %v119, %v129
  %v132 = vunpack.c.l.s4 1966171168
  %v133 = vunpack.c.0.s8 %v132
  %v134 = vlaneseq
  %v135 = vshrl.u32 %v134, 7
  %v136 = vsub.s32 %v133, %v135
  %v137 = vrot.slane %v123, %v136
  %v138 = vcombine.high %v130, %v130
  %v139 = vcombine.high %v137, %v137
  %v141 = vunpack.c.l.s4 1966171168
  %v142 = vunpack.c.0.s8 %v141
  %v143 = vlaneseq
  %v144 = vshrl.u32 %v143, 7
  %v145 = vsub.s32 %v142, %v144
  %v146 = vrot.slane %v130, %v145
  %v148 = vunpack.c.l.s4 1966171168
  %v149 = vunpack.c.0.s8 %v148
  %v150 = vlaneseq
  %v151 = vshrl.u32 %v150, 7
  %v152 = vsub.s32 %v149, %v151
  %v153 = vrot.slane %v137, %v152
  %v155 = vunpack.c.l.s4 1966171168
  %v156 = vunpack.c.0.s8 %v155
  %v157 = vlaneseq
  %v158 = vshrl.u32 %v157, 7
  %v159 = vsub.s32 %v156, %v158
  %v160 = vrot.slane %v138, %v159
  %v162 = vunpack.c.l.s4 1966171168
  %v163 = vunpack.c.0.s8 %v162
  %v164 = vlaneseq
  %v165 = vshrl.u32 %v164, 7
  %v166 = vsub.s32 %v163, %v165
  %v167 = vrot.slane %v139, %v166
  %v168 = vcombine.high %v146, %v146
  %v169 = vcombine.high %v153, %v153
  %v170 = vcombine.high %v160, %v160
  %v171 = vcombine.high %v167, %v167
  %172 = vrot.lane.b32.xlu0 %v146, 1
  %v173 = vpop.permute.xlu0 %172
  %174 = vrot.lane.b32.xlu0 %v160, 1
  %v175 = vpop.permute.xlu0 %174
  %176 = vrot.lane.b32.xlu0 %v168, 1
  %v177 = vpop.permute.xlu0 %176
  %178 = vrot.lane.b32.xlu0 %v170, 1
  %v179 = vpop.permute.xlu0 %178
  %180 = vrot.lane.b32.xlu0 %v153, 1
  %v181 = vpop.permute.xlu0 %180
  %182 = vrot.lane.b32.xlu0 %v167, 1
  %v183 = vpop.permute.xlu0 %182
  %184 = vrot.lane.b32.xlu0 %v169, 1
  %v185 = vpop.permute.xlu0 %184
  %186 = vrot.lane.b32.xlu0 %v171, 1
  %v187 = vpop.permute.xlu0 %186
  %v196 = vmul.f32 %v11, %v173
  %v197 = vmul.f32 %v12, %v175
  %v198 = vmul.f32 %v13, %v177
  %v199 = vmul.f32 %v14, %v179
  %v200 = vmul.f32 %v15, %v181
  %v201 = vmul.f32 %v16, %v183
  %v202 = vmul.f32 %v17, %v185
  %v203 = vmul.f32 %v18, %v187
  %v212 = vcombine.low %v196, %v197
  %v213 = vcombine.low %v198, %v199
  %v214 = vcombine.low %v200, %v201
  %v215 = vcombine.low %v202, %v203
  %v217 = vunpack.c.l.s4 1966171168
  %v218 = vunpack.c.0.s8 %v217
  %v219 = vlaneseq
  %v220 = vshrl.u32 %v219, 7
  %v221 = vsub.s32 %v218, %v220
  %v222 = vrot.slane %v212, %v221
  %v224 = vunpack.c.l.s4 1966171168
  %v225 = vunpack.c.0.s8 %v224
  %v226 = vlaneseq
  %v227 = vshrl.u32 %v226, 7
  %v228 = vsub.s32 %v225, %v227
  %v229 = vrot.slane %v213, %v228
  %v231 = vunpack.c.l.s4 1966171168
  %v232 = vunpack.c.0.s8 %v231
  %v233 = vlaneseq
  %v234 = vshrl.u32 %v233, 7
  %v235 = vsub.s32 %v232, %v234
  %v236 = vrot.slane %v214, %v235
  %v238 = vunpack.c.l.s4 1966171168
  %v239 = vunpack.c.0.s8 %v238
  %v240 = vlaneseq
  %v241 = vshrl.u32 %v240, 7
  %v242 = vsub.s32 %v239, %v241
  %v243 = vrot.slane %v215, %v242
  %v244 = vcombine.low %v222, %v229
  %v245 = vcombine.low %v236, %v243
  %v247 = vunpack.c.l.s4 1966171168
  %v248 = vunpack.c.0.s8 %v247
  %v249 = vlaneseq
  %v250 = vshrl.u32 %v249, 7
  %v251 = vsub.s32 %v248, %v250
  %v252 = vrot.slane %v244, %v251
  %v254 = vunpack.c.l.s4 1966171168
  %v255 = vunpack.c.0.s8 %v254
  %v256 = vlaneseq
  %v257 = vshrl.u32 %v256, 7
  %v258 = vsub.s32 %v255, %v257
  %v259 = vrot.slane %v245, %v258
  %v260 = vcombine.low %v252, %v259
  %261 = vrot.lane.b32.xlu0 %v260, 127
  %v262 = vpop.permute.xlu0 %261
  %vm264 = vcmask 89088
  %v265 = vsel %vm264, %v262, 0.0
  %266 = vadd.xlane.f32.xlu0 %v265
  %v267 = vpop.xlane.xlu0 %266
  %v269 = vlaneseq
  %v270 = vshrl.u32 %v269, 7
  %v271 = vsub.s32 0, %v270
  %v272 = vrot.slane %v267, %v271
  %v273 = vlaneseq
  %v274 = vshrl.u32 %v273, 7
  %v275 = vsub.s32 1, %v274
  %v276 = vrot.slane %v267, %v275
  %v277 = vlaneseq
  %v278 = vshrl.u32 %v277, 7
  %v279 = vsub.s32 2, %v278
  %v280 = vrot.slane %v267, %v279
  %v281 = vlaneseq
  %v282 = vshrl.u32 %v281, 7
  %v283 = vsub.s32 3, %v282
  %v284 = vrot.slane %v267, %v283
  %v285 = vlaneseq
  %v286 = vshrl.u32 %v285, 7
  %v287 = vsub.s32 4, %v286
  %v288 = vrot.slane %v267, %v287
  %v289 = vlaneseq
  %v290 = vshrl.u32 %v289, 7
  %v291 = vsub.s32 5, %v290
  %v292 = vrot.slane %v267, %v291
  %v293 = vlaneseq
  %v294 = vshrl.u32 %v293, 7
  %v295 = vsub.s32 6, %v294
  %v296 = vrot.slane %v267, %v295
  %v297 = vlaneseq
  %v298 = vshrl.u32 %v297, 7
  %v299 = vsub.s32 7, %v298
  %v300 = vrot.slane %v267, %v299
  %v309 = vadd.f32 %v11, %v272
  %v310 = vadd.f32 %v12, %v276
  %v311 = vadd.f32 %v13, %v280
  %v312 = vadd.f32 %v14, %v284
  %v313 = vadd.f32 %v15, %v288
  %v314 = vadd.f32 %v16, %v292
  %v315 = vadd.f32 %v17, %v296
  %v316 = vadd.f32 %v18, %v300
  %v317 = vmin.f32 %v11, 0.0
  %v318 = vmin.f32 %v12, 0.0
  %v319 = vmin.f32 %v13, 0.0
  %v320 = vmin.f32 %v14, 0.0
  %v321 = vmin.f32 %v15, 0.0
  %v322 = vmin.f32 %v16, 0.0
  %v323 = vmin.f32 %v17, 0.0
  %v324 = vmin.f32 %v18, 0.0
  %v325 = vmin.f32 %v196, 0.0
  %v326 = vmin.f32 %v197, 0.0
  %v327 = vmin.f32 %v198, 0.0
  %v328 = vmin.f32 %v199, 0.0
  %v329 = vmin.f32 %v200, 0.0
  %v330 = vmin.f32 %v201, 0.0
  %v331 = vmin.f32 %v202, 0.0
  %v332 = vmin.f32 %v203, 0.0
  %v341 = vcombine.low %v325, %v326
  %v342 = vcombine.low %v327, %v328
  %v343 = vcombine.low %v329, %v330
  %v344 = vcombine.low %v331, %v332
  %v346 = vunpack.c.l.s4 1966171168
  %v347 = vunpack.c.0.s8 %v346
  %v348 = vlaneseq
  %v349 = vshrl.u32 %v348, 7
  %v350 = vsub.s32 %v347, %v349
  %v351 = vrot.slane %v341, %v350
  %v353 = vunpack.c.l.s4 1966171168
  %v354 = vunpack.c.0.s8 %v353
  %v355 = vlaneseq
  %v356 = vshrl.u32 %v355, 7
  %v357 = vsub.s32 %v354, %v356
  %v358 = vrot.slane %v342, %v357
  %v360 = vunpack.c.l.s4 1966171168
  %v361 = vunpack.c.0.s8 %v360
  %v362 = vlaneseq
  %v363 = vshrl.u32 %v362, 7
  %v364 = vsub.s32 %v361, %v363
  %v365 = vrot.slane %v343, %v364
  %v367 = vunpack.c.l.s4 1966171168
  %v368 = vunpack.c.0.s8 %v367
  %v369 = vlaneseq
  %v370 = vshrl.u32 %v369, 7
  %v371 = vsub.s32 %v368, %v370
  %v372 = vrot.slane %v344, %v371
  %v373 = vcombine.low %v351, %v358
  %v374 = vcombine.low %v365, %v372
  %v376 = vunpack.c.l.s4 1966171168
  %v377 = vunpack.c.0.s8 %v376
  %v378 = vlaneseq
  %v379 = vshrl.u32 %v378, 7
  %v380 = vsub.s32 %v377, %v379
  %v381 = vrot.slane %v373, %v380
  %v383 = vunpack.c.l.s4 1966171168
  %v384 = vunpack.c.0.s8 %v383
  %v385 = vlaneseq
  %v386 = vshrl.u32 %v385, 7
  %v387 = vsub.s32 %v384, %v386
  %v388 = vrot.slane %v374, %v387
  %v389 = vcombine.low %v381, %v388
  %390 = vrot.lane.b32.xlu0 %v389, 127
  %v391 = vpop.permute.xlu0 %390
  %v393 = vsel %vm264, %v391, 0.0
  %394 = vadd.xlane.f32.xlu0 %v393
  %v395 = vpop.xlane.xlu0 %394
  %v397 = vlaneseq
  %v398 = vshrl.u32 %v397, 7
  %v399 = vsub.s32 0, %v398
  %v400 = vrot.slane %v395, %v399
  %v401 = vlaneseq
  %v402 = vshrl.u32 %v401, 7
  %v403 = vsub.s32 1, %v402
  %v404 = vrot.slane %v395, %v403
  %v405 = vlaneseq
  %v406 = vshrl.u32 %v405, 7
  %v407 = vsub.s32 2, %v406
  %v408 = vrot.slane %v395, %v407
  %v409 = vlaneseq
  %v410 = vshrl.u32 %v409, 7
  %v411 = vsub.s32 3, %v410
  %v412 = vrot.slane %v395, %v411
  %v413 = vlaneseq
  %v414 = vshrl.u32 %v413, 7
  %v415 = vsub.s32 4, %v414
  %v416 = vrot.slane %v395, %v415
  %v417 = vlaneseq
  %v418 = vshrl.u32 %v417, 7
  %v419 = vsub.s32 5, %v418
  %v420 = vrot.slane %v395, %v419
  %v421 = vlaneseq
  %v422 = vshrl.u32 %v421, 7
  %v423 = vsub.s32 6, %v422
  %v424 = vrot.slane %v395, %v423
  %v425 = vlaneseq
  %v426 = vshrl.u32 %v425, 7
  %v427 = vsub.s32 7, %v426
  %v428 = vrot.slane %v395, %v427
  %v437 = vadd.f32 %v317, %v400
  %v438 = vadd.f32 %v318, %v404
  %v439 = vadd.f32 %v319, %v408
  %v440 = vadd.f32 %v320, %v412
  %v441 = vadd.f32 %v321, %v416
  %v442 = vadd.f32 %v322, %v420
  %v443 = vadd.f32 %v323, %v424
  %v444 = vadd.f32 %v324, %v428
  %v445 = vmul.f32 %v437, 8e-05
  %v446 = vmul.f32 %v438, 8e-05
  %v447 = vmul.f32 %v439, 8e-05
  %v448 = vmul.f32 %v440, 8e-05
  %v449 = vmul.f32 %v441, 8e-05
  %v450 = vmul.f32 %v442, 8e-05
  %v451 = vmul.f32 %v443, 8e-05
  %v452 = vmul.f32 %v444, 8e-05
  %v453 = vrcp.pop %v309
  %v454 = vrcp.pop %v310
  %v455 = vrcp.pop %v311
  %v456 = vrcp.pop %v312
  %v457 = vrcp.pop %v313
  %v458 = vrcp.pop %v314
  %v459 = vrcp.pop %v315
  %v460 = vrcp.pop %v316
  %v461 = vmul.f32 %v11, %v453
  %v462 = vmul.f32 %v12, %v454
  %v463 = vmul.f32 %v13, %v455
  %v464 = vmul.f32 %v14, %v456
  %v465 = vmul.f32 %v15, %v457
  %v466 = vmul.f32 %v16, %v458
  %v467 = vmul.f32 %v17, %v459
  %v468 = vmul.f32 %v18, %v460
  %470 = vset.pattern.permute.xlu0 0
  %471 = vperm.xlu0 %470, %v453
  %v472 = vpop.permute.xlu0 %471
  %v474 = vlaneseq
  %v475 = vshrl.u32 %v474, 7
  %v476 = vsub.s32 0, %v475
  %v477 = vrot.slane %v472, %v476
  %479 = vset.pattern.permute.xlu0 0
  %480 = vperm.xlu0 %479, %v454
  %v481 = vpop.permute.xlu0 %480
  %v483 = vlaneseq
  %v484 = vshrl.u32 %v483, 7
  %v485 = vsub.s32 0, %v484
  %v486 = vrot.slane %v481, %v485
  %488 = vset.pattern.permute.xlu0 0
  %489 = vperm.xlu0 %488, %v455
  %v490 = vpop.permute.xlu0 %489
  %v492 = vlaneseq
  %v493 = vshrl.u32 %v492, 7
  %v494 = vsub.s32 0, %v493
  %v495 = vrot.slane %v490, %v494
  %497 = vset.pattern.permute.xlu0 0
  %498 = vperm.xlu0 %497, %v456
  %v499 = vpop.permute.xlu0 %498
  %v501 = vlaneseq
  %v502 = vshrl.u32 %v501, 7
  %v503 = vsub.s32 0, %v502
  %v504 = vrot.slane %v499, %v503
  %506 = vset.pattern.permute.xlu0 0
  %507 = vperm.xlu0 %506, %v457
  %v508 = vpop.permute.xlu0 %507
  %v510 = vlaneseq
  %v511 = vshrl.u32 %v510, 7
  %v512 = vsub.s32 0, %v511
  %v513 = vrot.slane %v508, %v512
  %515 = vset.pattern.permute.xlu0 0
  %516 = vperm.xlu0 %515, %v458
  %v517 = vpop.permute.xlu0 %516
  %v519 = vlaneseq
  %v520 = vshrl.u32 %v519, 7
  %v521 = vsub.s32 0, %v520
  %v522 = vrot.slane %v517, %v521
  %524 = vset.pattern.permute.xlu0 0
  %525 = vperm.xlu0 %524, %v459
  %v526 = vpop.permute.xlu0 %525
  %v528 = vlaneseq
  %v529 = vshrl.u32 %v528, 7
  %v530 = vsub.s32 0, %v529
  %v531 = vrot.slane %v526, %v530
  %533 = vset.pattern.permute.xlu0 0
  %534 = vperm.xlu0 %533, %v460
  %v535 = vpop.permute.xlu0 %534
  %v537 = vlaneseq
  %v538 = vshrl.u32 %v537, 7
  %v539 = vsub.s32 0, %v538
  %v540 = vrot.slane %v535, %v539
  %v541 = vmul.f32 %v196, %v477
  %v542 = vmul.f32 %v197, %v486
  %v543 = vmul.f32 %v198, %v495
  %v544 = vmul.f32 %v199, %v504
  %v545 = vmul.f32 %v200, %v513
  %v546 = vmul.f32 %v201, %v522
  %v547 = vmul.f32 %v202, %v531
  %v548 = vmul.f32 %v203, %v540
  %v557 = vcombine.low %v461, %v462
  %v558 = vcombine.low %v463, %v464
  %v559 = vcombine.low %v465, %v466
  %v560 = vcombine.low %v467, %v468
  %v562 = vunpack.c.l.s4 1966171168
  %v563 = vunpack.c.0.s8 %v562
  %v564 = vlaneseq
  %v565 = vshrl.u32 %v564, 7
  %v566 = vsub.s32 %v563, %v565
  %v567 = vrot.slane %v557, %v566
  %v569 = vunpack.c.l.s4 1966171168
  %v570 = vunpack.c.0.s8 %v569
  %v571 = vlaneseq
  %v572 = vshrl.u32 %v571, 7
  %v573 = vsub.s32 %v570, %v572
  %v574 = vrot.slane %v558, %v573
  %v576 = vunpack.c.l.s4 1966171168
  %v577 = vunpack.c.0.s8 %v576
  %v578 = vlaneseq
  %v579 = vshrl.u32 %v578, 7
  %v580 = vsub.s32 %v577, %v579
  %v581 = vrot.slane %v559, %v580
  %v583 = vunpack.c.l.s4 1966171168
  %v584 = vunpack.c.0.s8 %v583
  %v585 = vlaneseq
  %v586 = vshrl.u32 %v585, 7
  %v587 = vsub.s32 %v584, %v586
  %v588 = vrot.slane %v560, %v587
  %v589 = vcombine.low %v567, %v574
  %v590 = vcombine.low %v581, %v588
  %v592 = vunpack.c.l.s4 1966171168
  %v593 = vunpack.c.0.s8 %v592
  %v594 = vlaneseq
  %v595 = vshrl.u32 %v594, 7
  %v596 = vsub.s32 %v593, %v595
  %v597 = vrot.slane %v589, %v596
  %v599 = vunpack.c.l.s4 1966171168
  %v600 = vunpack.c.0.s8 %v599
  %v601 = vlaneseq
  %v602 = vshrl.u32 %v601, 7
  %v603 = vsub.s32 %v600, %v602
  %v604 = vrot.slane %v590, %v603
  %v605 = vcombine.low %v597, %v604
  %v607 = vrot.slane %v605, 7
  %v616 = vcombine.low %v541, %v542
  %v617 = vcombine.low %v543, %v544
  %v618 = vcombine.low %v545, %v546
  %v619 = vcombine.low %v547, %v548
  %v621 = vunpack.c.l.s4 1966171168
  %v622 = vunpack.c.0.s8 %v621
  %v623 = vlaneseq
  %v624 = vshrl.u32 %v623, 7
  %v625 = vsub.s32 %v622, %v624
  %v626 = vrot.slane %v616, %v625
  %v628 = vunpack.c.l.s4 1966171168
  %v629 = vunpack.c.0.s8 %v628
  %v630 = vlaneseq
  %v631 = vshrl.u32 %v630, 7
  %v632 = vsub.s32 %v629, %v631
  %v633 = vrot.slane %v617, %v632
  %v635 = vunpack.c.l.s4 1966171168
  %v636 = vunpack.c.0.s8 %v635
  %v637 = vlaneseq
  %v638 = vshrl.u32 %v637, 7
  %v639 = vsub.s32 %v636, %v638
  %v640 = vrot.slane %v618, %v639
  %v642 = vunpack.c.l.s4 1966171168
  %v643 = vunpack.c.0.s8 %v642
  %v644 = vlaneseq
  %v645 = vshrl.u32 %v644, 7
  %v646 = vsub.s32 %v643, %v645
  %v647 = vrot.slane %v619, %v646
  %v648 = vcombine.low %v626, %v633
  %v649 = vcombine.low %v640, %v647
  %v651 = vunpack.c.l.s4 1966171168
  %v652 = vunpack.c.0.s8 %v651
  %v653 = vlaneseq
  %v654 = vshrl.u32 %v653, 7
  %v655 = vsub.s32 %v652, %v654
  %v656 = vrot.slane %v648, %v655
  %v658 = vunpack.c.l.s4 1966171168
  %v659 = vunpack.c.0.s8 %v658
  %v660 = vlaneseq
  %v661 = vshrl.u32 %v660, 7
  %v662 = vsub.s32 %v659, %v661
  %v663 = vrot.slane %v649, %v662
  %v664 = vcombine.low %v656, %v663
  %665 = vrot.lane.b32.xlu0 %v664, 127
  %v666 = vpop.permute.xlu0 %665
  %v668 = vrot.slane %v666, 7
  %v677 = vcombine.low %v11, %v12
  %v678 = vcombine.low %v13, %v14
  %v679 = vcombine.low %v15, %v16
  %v680 = vcombine.low %v17, %v18
  %v682 = vunpack.c.l.s4 1966171168
  %v683 = vunpack.c.0.s8 %v682
  %v684 = vlaneseq
  %v685 = vshrl.u32 %v684, 7
  %v686 = vsub.s32 %v683, %v685
  %v687 = vrot.slane %v677, %v686
  %v689 = vunpack.c.l.s4 1966171168
  %v690 = vunpack.c.0.s8 %v689
  %v691 = vlaneseq
  %v692 = vshrl.u32 %v691, 7
  %v693 = vsub.s32 %v690, %v692
  %v694 = vrot.slane %v678, %v693
  %v696 = vunpack.c.l.s4 1966171168
  %v697 = vunpack.c.0.s8 %v696
  %v698 = vlaneseq
  %v699 = vshrl.u32 %v698, 7
  %v700 = vsub.s32 %v697, %v699
  %v701 = vrot.slane %v679, %v700
  %v703 = vunpack.c.l.s4 1966171168
  %v704 = vunpack.c.0.s8 %v703
  %v705 = vlaneseq
  %v706 = vshrl.u32 %v705, 7
  %v707 = vsub.s32 %v704, %v706
  %v708 = vrot.slane %v680, %v707
  %v709 = vcombine.low %v687, %v694
  %v710 = vcombine.low %v701, %v708
  %v712 = vunpack.c.l.s4 1966171168
  %v713 = vunpack.c.0.s8 %v712
  %v714 = vlaneseq
  %v715 = vshrl.u32 %v714, 7
  %v716 = vsub.s32 %v713, %v715
  %v717 = vrot.slane %v709, %v716
  %v719 = vunpack.c.l.s4 1966171168
  %v720 = vunpack.c.0.s8 %v719
  %v721 = vlaneseq
  %v722 = vshrl.u32 %v721, 7
  %v723 = vsub.s32 %v720, %v722
  %v724 = vrot.slane %v710, %v723
  %v725 = vcombine.low %v717, %v724
  %v727 = vsub.f32 %v607, %v725
  %v728 = vand.u32 2147483647, %v727
  %729 = vrot.lane.b32.xlu0 %v725, 127
  %v730 = vpop.permute.xlu0 %729
  %v732 = vsub.f32 %v668, %v730
  %v733 = vand.u32 2147483647, %v732
  %v734 = vsel %vm264, %v733, 0.0
  %735 = vadd.xlane.f32.xlu0 %v734
  %v736 = vpop.xlane.xlu0 %735
  %v737 = vadd.f32 %v728, %v736
  %vm738 = vcmp.eq.s32.totalorder %v21, 0
  %v739 = vmul.f32 %v737, 0.0025
  %v740 = vsub.f32 1.0, %v739
  %v741 = vsel %vm738, 1.0, %v740
  %v743 = vcombine.high %v741, %v741
  %v745 = vunpack.c.l.s4 1966171168
  %v746 = vunpack.c.0.s8 %v745
  %v747 = vlaneseq
  %v748 = vshrl.u32 %v747, 7
  %v749 = vsub.s32 %v746, %v748
  %v750 = vrot.slane %v741, %v749
  %v752 = vunpack.c.l.s4 1966171168
  %v753 = vunpack.c.0.s8 %v752
  %v754 = vlaneseq
  %v755 = vshrl.u32 %v754, 7
  %v756 = vsub.s32 %v753, %v755
  %v757 = vrot.slane %v743, %v756
  %v758 = vcombine.high %v750, %v750
  %v759 = vcombine.high %v757, %v757
  %v761 = vunpack.c.l.s4 1966171168
  %v762 = vunpack.c.0.s8 %v761
  %v763 = vlaneseq
  %v764 = vshrl.u32 %v763, 7
  %v765 = vsub.s32 %v762, %v764
  %v766 = vrot.slane %v750, %v765
  %v768 = vunpack.c.l.s4 1966171168
  %v769 = vunpack.c.0.s8 %v768
  %v770 = vlaneseq
  %v771 = vshrl.u32 %v770, 7
  %v772 = vsub.s32 %v769, %v771
  %v773 = vrot.slane %v757, %v772
  %v775 = vunpack.c.l.s4 1966171168
  %v776 = vunpack.c.0.s8 %v775
  %v777 = vlaneseq
  %v778 = vshrl.u32 %v777, 7
  %v779 = vsub.s32 %v776, %v778
  %v780 = vrot.slane %v758, %v779
  %v782 = vunpack.c.l.s4 1966171168
  %v783 = vunpack.c.0.s8 %v782
  %v784 = vlaneseq
  %v785 = vshrl.u32 %v784, 7
  %v786 = vsub.s32 %v783, %v785
  %v787 = vrot.slane %v759, %v786
  %v788 = vcombine.high %v766, %v766
  %v789 = vcombine.high %v773, %v773
  %v790 = vcombine.high %v780, %v780
  %v791 = vcombine.high %v787, %v787
  %v800 = vmul.f32 %v309, %v766
  %v801 = vmul.f32 %v310, %v780
  %v802 = vmul.f32 %v311, %v788
  %v803 = vmul.f32 %v312, %v790
  %v804 = vmul.f32 %v313, %v773
  %v805 = vmul.f32 %v314, %v787
  %v806 = vmul.f32 %v315, %v789
  %v807 = vmul.f32 %v316, %v791
  %v808 = vadd.f32 %v800, %v445
  %v809 = vadd.f32 %v801, %v446
  %v810 = vadd.f32 %v802, %v447
  %v811 = vadd.f32 %v803, %v448
  %v812 = vadd.f32 %v804, %v449
  %v813 = vadd.f32 %v805, %v450
  %v814 = vadd.f32 %v806, %v451
  %v815 = vadd.f32 %v807, %v452
  %v816 = vlog2.pop %v808
  %v817 = vmul.f32 %v816, 0.6931472
  %v818 = vlog2.pop %v809
  %v819 = vmul.f32 %v818, 0.6931472
  %v820 = vlog2.pop %v810
  %v821 = vmul.f32 %v820, 0.6931472
  %v822 = vlog2.pop %v811
  %v823 = vmul.f32 %v822, 0.6931472
  %v824 = vlog2.pop %v812
  %v825 = vmul.f32 %v824, 0.6931472
  %v826 = vlog2.pop %v813
  %v827 = vmul.f32 %v826, 0.6931472
  %v828 = vlog2.pop %v814
  %v829 = vmul.f32 %v828, 0.6931472
  %v830 = vlog2.pop %v815
  %v831 = vmul.f32 %v830, 0.6931472
  %v840 = vcombine.low %v817, %v819
  %v841 = vcombine.low %v821, %v823
  %v842 = vcombine.low %v825, %v827
  %v843 = vcombine.low %v829, %v831
  %v845 = vunpack.c.l.s4 1966171168
  %v846 = vunpack.c.0.s8 %v845
  %v847 = vlaneseq
  %v848 = vshrl.u32 %v847, 7
  %v849 = vsub.s32 %v846, %v848
  %v850 = vrot.slane %v840, %v849
  %v852 = vunpack.c.l.s4 1966171168
  %v853 = vunpack.c.0.s8 %v852
  %v854 = vlaneseq
  %v855 = vshrl.u32 %v854, 7
  %v856 = vsub.s32 %v853, %v855
  %v857 = vrot.slane %v841, %v856
  %v859 = vunpack.c.l.s4 1966171168
  %v860 = vunpack.c.0.s8 %v859
  %v861 = vlaneseq
  %v862 = vshrl.u32 %v861, 7
  %v863 = vsub.s32 %v860, %v862
  %v864 = vrot.slane %v842, %v863
  %v866 = vunpack.c.l.s4 1966171168
  %v867 = vunpack.c.0.s8 %v866
  %v868 = vlaneseq
  %v869 = vshrl.u32 %v868, 7
  %v870 = vsub.s32 %v867, %v869
  %v871 = vrot.slane %v843, %v870
  %v872 = vcombine.low %v850, %v857
  %v873 = vcombine.low %v864, %v871
  %v875 = vunpack.c.l.s4 1966171168
  %v876 = vunpack.c.0.s8 %v875
  %v877 = vlaneseq
  %v878 = vshrl.u32 %v877, 7
  %v879 = vsub.s32 %v876, %v878
  %v880 = vrot.slane %v872, %v879
  %v882 = vunpack.c.l.s4 1966171168
  %v883 = vunpack.c.0.s8 %v882
  %v884 = vlaneseq
  %v885 = vshrl.u32 %v884, 7
  %v886 = vsub.s32 %v883, %v885
  %v887 = vrot.slane %v873, %v886
  %v888 = vcombine.low %v880, %v887
  %vm890 = vcmask 7168
  %v891 = vsel %vm890, %v888, 0.0
  %892 = vadd.xlane.f32.xlu0 %v891
  %v893 = vpop.xlane.xlu0 %892
  %v894 = vrot.slane %v893, 4
  %v895 = vadd.f32 %v893, %v894
  %v896 = vrot.slane %v895, 2
  %v897 = vadd.f32 %v895, %v896
  %v898 = vrot.slane %v897, 1
  %v899 = vadd.f32 %v897, %v898
  %s900 = vtos %v899
  %v901 = vstv %s900
  %vm902 = vcmp.eq.s32.totalorder %v27, 0
  %v903 = vmul.f32 %v901, -0.125
  %v904 = vmul.f32 %v901, 1.442695
  %v905 = vpow.pop %v904
  %v906 = vsel %vm902, %v903, %v905
  %vm907 = vcmask 8192
  %908 = vst.msk [vmem:[%s2] sm:$0x1] %vm907, %v906
  // Predicated region
  $region10: #{batch_loss.1} parent=0 // pred_check
    _
  $region11: #{batch_loss.1} parent=0 // pred_check_branch
    %910 = sbr.rel (0) target = $region13
  $region12: #{batch_loss.1} parent=0 // pred_region
    _
  $region13: #{batch_loss.1} parent=0 // pred_fallthru
    _
  // Predicated region
  $region14: #{batch_loss.1} parent=0 // pred_check
    _
  $region15: #{batch_loss.1} parent=0 // pred_check_branch
    %912 = sbr.rel (0) target = $region17
  $region16: #{batch_loss.1} parent=0 // pred_region
    _
  $region17: #{batch_loss.1} parent=0 // pred_fallthru
    _

</llo_original>
